<compile_context>
chip_gen: v6e
topology: v6e:2x2x1
jax: 0.10.0
libtpu: 0.0.40
codegen_flags: <defaults>
</compile_context>

<pallas_src>
import functools

import jax
import jax.numpy as jnp
from jax.experimental import pallas as pl
from jax.experimental.pallas import tpu as pltpu

BN_EPS = 1e-5


def _round_up(a, b):
    return -(-a // b) * b


# ---------------------------------------------------------------------------
# Kernel A: fused ReLU + im2col staging + single big-K MXU matmul + BN stats
# ---------------------------------------------------------------------------
def _conv_stats_kernel(x_ref, w_ref, mask_ref, y_ref, stats_ref, slab_ref, *,
                       k, s, c_in, wr, l_wide):
    # x_ref:    (1, s*s*C_in, L_in) f32  residue-major, row-flattened, 0-padded
    # w_ref:    (C_out, k*k*C_in) bf16   conv weights, tap-major columns
    # mask_ref: (1, L_wide) f32          1.0 on valid (ow < W_out) wide columns
    # y_ref:    (1, C_out, L_wide) bf16  "wide" conv output (cropped in B)
    # stats_ref:(1, C_out, 2) f32        per-batch [sum, sumsq] over valid px
    # slab_ref: (k*k*C_in, L_wide) f32   im2col slab (VMEM scratch)
    for kh in range(k):                                    # static unroll, k*k
        for kw in range(k):
            base = ((kh % s) * s + (kw % s)) * c_in        # residue block rows
            off = (kh // s) * wr + (kw // s)               # row-flat shift
            r0 = (kh * k + kw) * c_in
            x_sl = x_ref[0, base:base + c_in, off:off + l_wide]  # ref slice
            slab_ref[r0:r0 + c_in, :] = jnp.maximum(x_sl, 0.0)   # fused ReLU
    # One MXU matmul: contraction depth K = k*k*C_in, bf16 operands, f32 acc.
    acc = jnp.dot(w_ref[...], slab_ref[...].astype(jnp.bfloat16),
                  preferred_element_type=jnp.float32)      # (C_out, L_wide)
    y_ref[0] = acc.astype(y_ref.dtype)                     # bf16 intermediate
    m = acc * mask_ref[...]                                # zero garbage cols
    # TODO(synk): E[x^2]-E[x]^2 can cancel when |mean| >> std; acceptable here.
    stats_ref[0, :, 0:1] = jnp.sum(m, axis=-1, keepdims=True)
    stats_ref[0, :, 1:2] = jnp.sum(m * m, axis=-1, keepdims=True)


# ---------------------------------------------------------------------------
# Kernel B: streaming BN apply (folded constants) + crop to lane-dense slab
# ---------------------------------------------------------------------------
def _bn_kernel(y_ref, scale_ref, bias_ref, out_ref, *, w_out, wr, h_out):
    # y_ref:   (nb, C_out, H_out*Wr) bf16      wide conv output
    # scale:   (1, C_out, 1) f32  = gamma * inv_std
    # bias:    (1, C_out, 1) f32  = beta - mean * gamma * inv_std
    # out_ref: (nb, C_out, H_out*W_out) f32    lane-dense output slab
    sc = scale_ref[...]
    bs = bias_ref[...]
    for h in range(h_out):                                 # static unroll
        row = y_ref[:, :, h * wr:h * wr + w_out].astype(jnp.float32)
        out_ref[:, :, h * w_out:(h + 1) * w_out] = row * sc + bs


# ---------------------------------------------------------------------------
# Wrapper
# ---------------------------------------------------------------------------
def std_conv(x, w, gamma=None, beta=None, *, stride=1, padding=0):
    """ReLU -> Conv2d(C_in, C_out, k, stride, padding, bias=False) -> BN2d."""
    N, C_in, H, W = x.shape
    C_out, C_in_w, k, k2 = w.shape
    assert C_in_w == C_in and k == k2, "square kernels only"
    s, p = int(stride), int(padding)

    H_out = (H + 2 * p - k) // s + 1
    W_out = (W + 2 * p - k) // s + 1
    Hr = -(-(H + 2 * p) // s)                    # ceil(Hp / s)
    Wr = -(-(W + 2 * p) // s)
    Hpad, Wpad = Hr * s, Wr * s
    C_eff = s * s * C_in
    KKC = k * k * C_in
    L_wide = H_out * Wr                          # "wide" rows keep Wr columns
    L_need = ((k - 1) // s) * (Wr + 1) + L_wide  # max slice end inside kernel
    L_in = _round_up(max(L_need, Hr * Wr), 128)  # lane-pad the flat input

    xf = x.astype(jnp.float32)
    # zero-pad (conv padding + stride rounding); ReLU(0)=0 so padding commutes
    xp = jnp.pad(xf, ((0, 0), (0, 0), (p, Hpad - H - p), (p, Wpad - W - p)))
    if s == 1:
        xw = xp.reshape(N, C_in, Hr * Wr)        # pure reshape, no data move
    else:
        # residue-major rearrangement: xw[n, (r1*s+r2)*C_in + c, i*Wr + j]
        #                               = xp[n, c, i*s + r1, j*s + r2]
        # TODO(synk): for s > 1 this is one extra XLA transpose pass over x;
        # it could be folded into kernel A with strided pl.ds reads.
        xw = xp.reshape(N, C_in, Hr, s, Wr, s).transpose(0, 3, 5, 1, 2, 4)
        xw = xw.reshape(N, C_eff, Hr * Wr)
    xw = jnp.pad(xw, ((0, 0), (0, 0), (0, L_in - Hr * Wr)))

    # weights as (C_out, k*k*C_in); bf16 MXU operands
    w2 = w.astype(jnp.float32).transpose(0, 2, 3, 1).reshape(C_out, KKC)
    w2 = w2.astype(jnp.bfloat16)
    # lane mask of valid wide-columns (ow < W_out)
    mask = (jnp.arange(L_wide) % Wr < W_out).astype(jnp.float32)
    mask = mask.reshape(1, L_wide)

    # --- kernel A: conv + per-batch stats (grid over N, megacore-parallel) --
    vmem_a = (
        2 * C_eff * L_in * 4                                       # x blocks
        + 2 * _round_up(C_out, 16) * _round_up(L_wide, 128) * 2    # y blocks
        + 2 * _round_up(C_out, 8) * 128 * 4                        # stats
        + 2 * _round_up(C_out, 16) * _round_up(KKC, 128) * 2       # weights
        + 2 * 8 * _round_up(L_wide, 128) * 4                       # mask
        + _round_up(KKC, 8) * _round_up(L_wide, 128) * 4           # slab
    )
    vmem_a = int(min(64 << 20, max(2 * vmem_a, 16 << 20)))

    kern_a = functools.partial(_conv_stats_kernel, k=k, s=s, c_in=C_in,
                               wr=Wr, l_wide=L_wide)
    y_wide, stats = pl.pallas_call(
        kern_a,
        out_shape=(jax.ShapeDtypeStruct((N, C_out, L_wide), jnp.bfloat16),
                   jax.ShapeDtypeStruct((N, C_out, 2), jnp.float32)),
        grid_spec=pltpu.PrefetchScalarGridSpec(
            num_scalar_prefetch=0,
            grid=(N,),
            in_specs=[pl.BlockSpec((1, C_eff, L_in), lambda n: (n, 0, 0)),
                      pl.BlockSpec((C_out, KKC), lambda n: (0, 0)),
                      pl.BlockSpec((1, L_wide), lambda n: (0, 0))],
            out_specs=(pl.BlockSpec((1, C_out, L_wide), lambda n: (n, 0, 0)),
                       pl.BlockSpec((1, C_out, 2), lambda n: (n, 0, 0))),
            scratch_shapes=[pltpu.VMEM((KKC, L_wide), jnp.float32)]),
        compiler_params=pltpu.CompilerParams(
            dimension_semantics=("parallel",),
            vmem_limit_bytes=vmem_a),
    )(xw, w2, mask)

    # Tiny cross-batch reduction + BN constant folding in plain JAX (f32).
    cnt = float(N * H_out * W_out)
    total = jnp.sum(stats, axis=0)                        # (C_out, 2)
    mean = total[:, 0] / cnt
    var = jnp.maximum(total[:, 1] / cnt - mean * mean, 0.0)  # biased (training)
    inv = jax.lax.rsqrt(var + BN_EPS)
    if gamma is None:
        gamma = jnp.ones((C_out,), jnp.float32)
    if beta is None:
        beta = jnp.zeros((C_out,), jnp.float32)
    g = gamma.astype(jnp.float32)
    b = beta.astype(jnp.float32)
    scale = (g * inv).reshape(1, C_out, 1)
    bias = (b - mean * g * inv).reshape(1, C_out, 1)

    # --- kernel B: streaming BN apply, lane-dense output ---------------------
    L_out = H_out * W_out
    bytes_per_n = C_out * L_wide * 2 + C_out * L_out * 4
    target = 6 << 20                              # ~6 MiB blocks
    nb = max(1, min(N, target // max(1, bytes_per_n)))
    if N >= 2:
        nb = min(nb, -(-N // 2))                  # keep >= 2 parallel steps
    n_blocks = pl.cdiv(N, nb)

    vmem_b = (2 * nb * C_out * _round_up(L_wide, 128) * 2
              + 2 * nb * C_out * _round_up(L_out, 128) * 4
              + 4 * _round_up(C_out, 8) * 128 * 4)
    vmem_b = int(min(64 << 20, max(2 * vmem_b, 16 << 20)))

    kern_b = functools.partial(_bn_kernel, w_out=W_out, wr=Wr, h_out=H_out)
    out_flat = pl.pallas_call(
        kern_b,
        out_shape=jax.ShapeDtypeStruct((N, C_out, L_out), jnp.float32),
        grid_spec=pltpu.PrefetchScalarGridSpec(
            num_scalar_prefetch=0,
            grid=(n_blocks,),
            in_specs=[pl.BlockSpec((nb, C_out, L_wide), lambda i: (i, 0, 0)),
                      pl.BlockSpec((1, C_out, 1), lambda i: (0, 0, 0)),
                      pl.BlockSpec((1, C_out, 1), lambda i: (0, 0, 0))],
            out_specs=pl.BlockSpec((nb, C_out, L_out), lambda i: (i, 0, 0))),
        compiler_params=pltpu.CompilerParams(
            dimension_semantics=("parallel",),
            vmem_limit_bytes=vmem_b),
    )(y_wide, scale, bias)
    return out_flat.reshape(N, C_out, H_out, W_out)


# ---------------------------------------------------------------------------
# Pure-JAX reference (for correctness check)
# ---------------------------------------------------------------------------
def _reference(x, w, gamma, beta, stride, padding):
    xr = jnp.maximum(x.astype(jnp.float32), 0.0)
    y = jax.lax.conv_general_dilated(
        xr, w.astype(jnp.float32),
        window_strides=(stride, stride),
        padding=[(padding, padding), (padding, padding)],
        dimension_numbers=("NCHW", "OIHW", "NCHW"),
        precision=jax.lax.Precision.HIGHEST)
    mean = jnp.mean(y, axis=(0, 2, 3), keepdims=True)
    var = jnp.mean((y - mean) ** 2, axis=(0, 2, 3), keepdims=True)
    yn = (y - mean) * jax.lax.rsqrt(var + BN_EPS)
    return yn * gamma.reshape(1, -1, 1, 1) + beta.reshape(1, -1, 1, 1)


if __name__ == "__main__":
    key = jax.random.PRNGKey(0)
    kx, kw_, kg, kb = jax.random.split(key, 4)
    N, C_in, C_out, H, W, K = 2, 4, 8, 16, 16, 3

    x = jax.random.normal(kx, (N, C_in, H, W), dtype=jnp.float32)
    w = jax.random.normal(kw_, (C_out, C_in, K, K), dtype=jnp.float32) * 0.1
    # nonzero affine params so the BN math is actually exercised by the check
    gamma = 1.0 + 0.5 * jax.random.normal(kg, (C_out,), dtype=jnp.float32)
    beta = 0.1 * jax.random.normal(kb, (C_out,), dtype=jnp.float32)

    for stride, padding in ((1, 1), (2, 1)):
        out = std_conv(x, w, gamma, beta, stride=stride, padding=padding)
        out = jax.block_until_ready(out)
        ref = _reference(x, w, gamma, beta, stride, padding)
        assert out.shape == ref.shape, (out.shape, ref.shape)
        # tolerance accounts for bf16 MXU operands and the bf16 y intermediate
        # (accumulation, BN stats and constant folding stay in f32)
        assert jnp.allclose(out, ref, atol=3e-2, rtol=3e-2), \
            f"mismatch vs reference (stride={stride}, padding={padding})"

    print("KERNEL_OK")
</pallas_src>

<mosaic_0001>
module attributes {stable_mosaic.version = 11 : i64} {
  func.func @_conv_stats_kernel(%arg0: i32, %arg1: memref<1x4x384xf32, #tpu.memory_space<vmem>>, %arg2: memref<8x36xbf16, #tpu.memory_space<vmem>>, %arg3: memref<1x288xf32, #tpu.memory_space<vmem>>, %arg4: memref<1x8x288xbf16, #tpu.memory_space<vmem>>, %arg5: memref<1x8x2xf32, #tpu.memory_space<vmem>>, %arg6: memref<36x288xf32, #tpu.memory_space<vmem>>) attributes {dimension_semantics = [#tpu.dimension_semantics<parallel>], iteration_bounds = array<i64: 2>, scalar_prefetch = 0 : i64, scratch_operands = 1 : i64, tpu.core_type = #tpu.core_type<tc>, window_params = [{transform_indices = @transform_0, window_bounds = array<i64: 1, 4, 384>}, {pipeline_mode = #tpu.pipeline_mode<synchronous>, transform_indices = @transform_1, window_bounds = array<i64: 8, 36>}, {pipeline_mode = #tpu.pipeline_mode<synchronous>, transform_indices = @transform_2, window_bounds = array<i64: 1, 288>}, {transform_indices = @transform_3, window_bounds = array<i64: 1, 8, 288>}, {transform_indices = @transform_4, window_bounds = array<i64: 1, 8, 2>}]} {
    %c0 = arith.constant 0 : index
    %c0_0 = arith.constant 0 : index
    %c0_1 = arith.constant 0 : index
    %0 = vector.load %arg1[%c0, %c0_0, %c0_1] : memref<1x4x384xf32, #tpu.memory_space<vmem>>, vector<1x4x288xf32>
    %1 = vector.shape_cast %0 : vector<1x4x288xf32> to vector<4x288xf32>
    %cst = arith.constant 0.000000e+00 : f32
    %2 = vector.broadcast %cst : f32 to vector<4x288xf32>
    %3 = arith.maximumf %1, %2 : vector<4x288xf32>
    %c0_2 = arith.constant 0 : index
    %c0_3 = arith.constant 0 : index
    %4 = vector.load %arg6[%c0_2, %c0_3] : memref<36x288xf32, #tpu.memory_space<vmem>>, vector<4x288xf32>
    tpu.vector_store %arg6[%c0_2, %c0_3], %3 {strides = array<i32>} : memref<36x288xf32, #tpu.memory_space<vmem>>, vector<4x288xf32>,
    %c0_4 = arith.constant 0 : index
    %c0_5 = arith.constant 0 : index
    %c1 = arith.constant 1 : index
    %5 = vector.load %arg1[%c0_4, %c0_5, %c1] : memref<1x4x384xf32, #tpu.memory_space<vmem>>, vector<1x4x288xf32>
    %6 = vector.shape_cast %5 : vector<1x4x288xf32> to vector<4x288xf32>
    %cst_6 = arith.constant 0.000000e+00 : f32
    %7 = vector.broadcast %cst_6 : f32 to vector<4x288xf32>
    %8 = arith.maximumf %6, %7 : vector<4x288xf32>
    %c4 = arith.constant 4 : index
    %c0_7 = arith.constant 0 : index
    %9 = vector.load %arg6[%c4, %c0_7] : memref<36x288xf32, #tpu.memory_space<vmem>>, vector<4x288xf32>
    tpu.vector_store %arg6[%c4, %c0_7], %8 {strides = array<i32>} : memref<36x288xf32, #tpu.memory_space<vmem>>, vector<4x288xf32>,
    %c0_8 = arith.constant 0 : index
    %c0_9 = arith.constant 0 : index
    %c2 = arith.constant 2 : index
    %10 = vector.load %arg1[%c0_8, %c0_9, %c2] : memref<1x4x384xf32, #tpu.memory_space<vmem>>, vector<1x4x288xf32>
    %11 = vector.shape_cast %10 : vector<1x4x288xf32> to vector<4x288xf32>
    %cst_10 = arith.constant 0.000000e+00 : f32
    %12 = vector.broadcast %cst_10 : f32 to vector<4x288xf32>
    %13 = arith.maximumf %11, %12 : vector<4x288xf32>
    %c8 = arith.constant 8 : index
    %c0_11 = arith.constant 0 : index
    %14 = vector.load %arg6[%c8, %c0_11] : memref<36x288xf32, #tpu.memory_space<vmem>>, vector<4x288xf32>
    tpu.vector_store %arg6[%c8, %c0_11], %13 {strides = array<i32>} : memref<36x288xf32, #tpu.memory_space<vmem>>, vector<4x288xf32>,
    %c0_12 = arith.constant 0 : index
    %c0_13 = arith.constant 0 : index
    %c18 = arith.constant 18 : index
    %15 = vector.load %arg1[%c0_12, %c0_13, %c18] : memref<1x4x384xf32, #tpu.memory_space<vmem>>, vector<1x4x288xf32>
    %16 = vector.shape_cast %15 : vector<1x4x288xf32> to vector<4x288xf32>
    %cst_14 = arith.constant 0.000000e+00 : f32
    %17 = vector.broadcast %cst_14 : f32 to vector<4x288xf32>
    %18 = arith.maximumf %16, %17 : vector<4x288xf32>
    %c12 = arith.constant 12 : index
    %c0_15 = arith.constant 0 : index
    %19 = vector.load %arg6[%c12, %c0_15] : memref<36x288xf32, #tpu.memory_space<vmem>>, vector<4x288xf32>
    tpu.vector_store %arg6[%c12, %c0_15], %18 {strides = array<i32>} : memref<36x288xf32, #tpu.memory_space<vmem>>, vector<4x288xf32>,
    %c0_16 = arith.constant 0 : index
    %c0_17 = arith.constant 0 : index
    %c19 = arith.constant 19 : index
    %20 = vector.load %arg1[%c0_16, %c0_17, %c19] : memref<1x4x384xf32, #tpu.memory_space<vmem>>, vector<1x4x288xf32>
    %21 = vector.shape_cast %20 : vector<1x4x288xf32> to vector<4x288xf32>
    %cst_18 = arith.constant 0.000000e+00 : f32
    %22 = vector.broadcast %cst_18 : f32 to vector<4x288xf32>
    %23 = arith.maximumf %21, %22 : vector<4x288xf32>
    %c16 = arith.constant 16 : index
    %c0_19 = arith.constant 0 : index
    %24 = vector.load %arg6[%c16, %c0_19] : memref<36x288xf32, #tpu.memory_space<vmem>>, vector<4x288xf32>
    tpu.vector_store %arg6[%c16, %c0_19], %23 {strides = array<i32>} : memref<36x288xf32, #tpu.memory_space<vmem>>, vector<4x288xf32>,
    %c0_20 = arith.constant 0 : index
    %c0_21 = arith.constant 0 : index
    %c20 = arith.constant 20 : index
    %25 = vector.load %arg1[%c0_20, %c0_21, %c20] : memref<1x4x384xf32, #tpu.memory_space<vmem>>, vector<1x4x288xf32>
    %26 = vector.shape_cast %25 : vector<1x4x288xf32> to vector<4x288xf32>
    %cst_22 = arith.constant 0.000000e+00 : f32
    %27 = vector.broadcast %cst_22 : f32 to vector<4x288xf32>
    %28 = arith.maximumf %26, %27 : vector<4x288xf32>
    %c20_23 = arith.constant 20 : index
    %c0_24 = arith.constant 0 : index
    %29 = vector.load %arg6[%c20_23, %c0_24] : memref<36x288xf32, #tpu.memory_space<vmem>>, vector<4x288xf32>
    tpu.vector_store %arg6[%c20_23, %c0_24], %28 {strides = array<i32>} : memref<36x288xf32, #tpu.memory_space<vmem>>, vector<4x288xf32>,
    %c0_25 = arith.constant 0 : index
    %c0_26 = arith.constant 0 : index
    %c36 = arith.constant 36 : index
    %30 = vector.load %arg1[%c0_25, %c0_26, %c36] : memref<1x4x384xf32, #tpu.memory_space<vmem>>, vector<1x4x288xf32>
    %31 = vector.shape_cast %30 : vector<1x4x288xf32> to vector<4x288xf32>
    %cst_27 = arith.constant 0.000000e+00 : f32
    %32 = vector.broadcast %cst_27 : f32 to vector<4x288xf32>
    %33 = arith.maximumf %31, %32 : vector<4x288xf32>
    %c24 = arith.constant 24 : index
    %c0_28 = arith.constant 0 : index
    %34 = vector.load %arg6[%c24, %c0_28] : memref<36x288xf32, #tpu.memory_space<vmem>>, vector<4x288xf32>
    tpu.vector_store %arg6[%c24, %c0_28], %33 {strides = array<i32>} : memref<36x288xf32, #tpu.memory_space<vmem>>, vector<4x288xf32>,
    %c0_29 = arith.constant 0 : index
    %c0_30 = arith.constant 0 : index
    %c37 = arith.constant 37 : index
    %35 = vector.load %arg1[%c0_29, %c0_30, %c37] : memref<1x4x384xf32, #tpu.memory_space<vmem>>, vector<1x4x288xf32>
    %36 = vector.shape_cast %35 : vector<1x4x288xf32> to vector<4x288xf32>
    %cst_31 = arith.constant 0.000000e+00 : f32
    %37 = vector.broadcast %cst_31 : f32 to vector<4x288xf32>
    %38 = arith.maximumf %36, %37 : vector<4x288xf32>
    %c28 = arith.constant 28 : index
    %c0_32 = arith.constant 0 : index
    %39 = vector.load %arg6[%c28, %c0_32] : memref<36x288xf32, #tpu.memory_space<vmem>>, vector<4x288xf32>
    tpu.vector_store %arg6[%c28, %c0_32], %38 {strides = array<i32>} : memref<36x288xf32, #tpu.memory_space<vmem>>, vector<4x288xf32>,
    %c0_33 = arith.constant 0 : index
    %c0_34 = arith.constant 0 : index
    %c38 = arith.constant 38 : index
    %40 = vector.load %arg1[%c0_33, %c0_34, %c38] : memref<1x4x384xf32, #tpu.memory_space<vmem>>, vector<1x4x288xf32>
    %41 = vector.shape_cast %40 : vector<1x4x288xf32> to vector<4x288xf32>
    %cst_35 = arith.constant 0.000000e+00 : f32
    %42 = vector.broadcast %cst_35 : f32 to vector<4x288xf32>
    %43 = arith.maximumf %41, %42 : vector<4x288xf32>
    %c32 = arith.constant 32 : index
    %c0_36 = arith.constant 0 : index
    %44 = vector.load %arg6[%c32, %c0_36] : memref<36x288xf32, #tpu.memory_space<vmem>>, vector<4x288xf32>
    tpu.vector_store %arg6[%c32, %c0_36], %43 {strides = array<i32>} : memref<36x288xf32, #tpu.memory_space<vmem>>, vector<4x288xf32>,
    %c0_37 = arith.constant 0 : index
    %c0_38 = arith.constant 0 : index
    %45 = vector.load %arg2[%c0_37, %c0_38] : memref<8x36xbf16, #tpu.memory_space<vmem>>, vector<8x36xbf16>
    %c0_39 = arith.constant 0 : index
    %c0_40 = arith.constant 0 : index
    %46 = vector.load %arg6[%c0_39, %c0_40] : memref<36x288xf32, #tpu.memory_space<vmem>>, vector<36x288xf32>
    %47 = arith.truncf %46 : vector<36x288xf32> to vector<36x288xbf16>
    %cst_41 = arith.constant dense<0.000000e+00> : vector<8x288xf32>
    %48 = tpu.matmul %45, %47, %cst_41 {dimension_numbers = #tpu.dot_dimension_numbers<[1], [0], [0], [1], [0, 0, 1, 1], [], []>} : vector<8x36xbf16>, vector<36x288xbf16>, vector<8x288xf32> -> vector<8x288xf32>
    %49 = arith.truncf %48 : vector<8x288xf32> to vector<8x288xbf16>
    %c0_42 = arith.constant 0 : index
    %c0_43 = arith.constant 0 : index
    %c0_44 = arith.constant 0 : index
    %50 = vector.load %arg4[%c0_42, %c0_43, %c0_44] : memref<1x8x288xbf16, #tpu.memory_space<vmem>>, vector<1x8x288xbf16>
    %51 = vector.shape_cast %50 : vector<1x8x288xbf16> to vector<8x288xbf16>
    %52 = vector.shape_cast %49 : vector<8x288xbf16> to vector<1x8x288xbf16>
    tpu.vector_store %arg4[%c0_42, %c0_43, %c0_44], %52 {strides = array<i32>} : memref<1x8x288xbf16, #tpu.memory_space<vmem>>, vector<1x8x288xbf16>,
    %c0_45 = arith.constant 0 : index
    %c0_46 = arith.constant 0 : index
    %53 = vector.load %arg3[%c0_45, %c0_46] : memref<1x288xf32, #tpu.memory_space<vmem>>, vector<1x288xf32>
    %54 = vector.broadcast %53 : vector<1x288xf32> to vector<8x288xf32>
    %55 = arith.mulf %48, %54 : vector<8x288xf32>
    %cst_47 = arith.constant dense<0.000000e+00> : vector<8xf32>
    %56 = vector.multi_reduction <add>, %55, %cst_47 [1] : vector<8x288xf32> to vector<8xf32>
    %57 = vector.shape_cast %56 : vector<8xf32> to vector<8x1xf32>
    %c0_48 = arith.constant 0 : index
    %c0_49 = arith.constant 0 : index
    %c0_50 = arith.constant 0 : index
    %58 = vector.load %arg5[%c0_48, %c0_49, %c0_50] : memref<1x8x2xf32, #tpu.memory_space<vmem>>, vector<1x8x1xf32>
    %59 = vector.shape_cast %58 : vector<1x8x1xf32> to vector<8x1xf32>
    %60 = vector.shape_cast %57 : vector<8x1xf32> to vector<1x8x1xf32>
    tpu.vector_store %arg5[%c0_48, %c0_49, %c0_50], %60 {strides = array<i32>} : memref<1x8x2xf32, #tpu.memory_space<vmem>>, vector<1x8x1xf32>,
    %61 = arith.mulf %55, %55 : vector<8x288xf32>
    %cst_51 = arith.constant dense<0.000000e+00> : vector<8xf32>
    %62 = vector.multi_reduction <add>, %61, %cst_51 [1] : vector<8x288xf32> to vector<8xf32>
    %63 = vector.shape_cast %62 : vector<8xf32> to vector<8x1xf32>
    %c0_52 = arith.constant 0 : index
    %c0_53 = arith.constant 0 : index
    %c1_54 = arith.constant 1 : index
    %64 = vector.load %arg5[%c0_52, %c0_53, %c1_54] : memref<1x8x2xf32, #tpu.memory_space<vmem>>, vector<1x8x1xf32>
    %65 = vector.shape_cast %64 : vector<1x8x1xf32> to vector<8x1xf32>
    %66 = vector.shape_cast %63 : vector<8x1xf32> to vector<1x8x1xf32>
    tpu.vector_store %arg5[%c0_52, %c0_53, %c1_54], %66 {strides = array<i32>} : memref<1x8x2xf32, #tpu.memory_space<vmem>>, vector<1x8x1xf32>,
    return
  }
  func.func @transform_0(%arg0: i32) -> (i32, i32, i32) {
    %c0_i32 = arith.constant 0 : i32
    %c0_i32_0 = arith.constant 0 : i32
    %c0_i32_1 = arith.constant 0 : i32
    return %arg0, %c0_i32, %c0_i32_0 : i32, i32, i32
  }
  func.func @transform_1(%arg0: i32) -> (i32, i32) {
    %c0_i32 = arith.constant 0 : i32
    %c0_i32_0 = arith.constant 0 : i32
    %c0_i32_1 = arith.constant 0 : i32
    return %c0_i32, %c0_i32_0 : i32, i32
  }
  func.func @transform_2(%arg0: i32) -> (i32, i32) {
    %c0_i32 = arith.constant 0 : i32
    %c0_i32_0 = arith.constant 0 : i32
    %c0_i32_1 = arith.constant 0 : i32
    return %c0_i32, %c0_i32_0 : i32, i32
  }
  func.func @transform_3(%arg0: i32) -> (i32, i32, i32) {
    %c0_i32 = arith.constant 0 : i32
    %c0_i32_0 = arith.constant 0 : i32
    %c0_i32_1 = arith.constant 0 : i32
    return %arg0, %c0_i32, %c0_i32_0 : i32, i32, i32
  }
  func.func @transform_4(%arg0: i32) -> (i32, i32, i32) {
    %c0_i32 = arith.constant 0 : i32
    %c0_i32_0 = arith.constant 0 : i32
    %c0_i32_1 = arith.constant 0 : i32
    return %arg0, %c0_i32, %c0_i32_0 : i32, i32, i32
  }
}

</mosaic_0001>

<llo_original>
// kernel: tpu_custom_call.1
$region0: #{tpu_custom_call.1}
  #allocation0 [shape = 'u32[]', space=smem, size = 0x4, offset = 0x4, fixed_abs, tag = 'smem constant byte address 0x4 - core index']
  #allocation1 [shape = 'u32[144,128]{1,0:T(1,128)}', space=vmem, size = 0x12000, scoped, tag = 'internal scratch']
  #allocation2 [shape = 'f32[36,288]{1,0:T(8,128)}', space=vmem, size = 0xf000, scoped, tag = 'scratch operand']
  %s0 = inlined_call_operand.hbm [shape: f32[2,4,384], index: 0, kind: input, shape index: {}]
  %s1 = inlined_call_operand.hbm [shape: bf16[8,36], index: 1, kind: input, shape index: {}]
  %s2 = inlined_call_operand.vmem [shape: f32[1,288], index: 2, kind: input, shape index: {}]
  %s3 = inlined_call_operand.hbm [shape: bf16[2,8,288], index: 3, kind: output, shape index: {0}]
  %s4 = inlined_call_operand.vmem [shape: f32[2,8,2], index: 4, kind: output, shape index: {1}]
  %5 = xla_tuple %s3, %s4
  %s6 = sld [smem:[#allocation0]]
  $region61: #{tpu_custom_call.1} parent=0
    _
  %s8 = ssub.s32 1, %s6
  %s9 = scalar_select 0, %s8, %s6
  $region1: #{tpu_custom_call.1} parent=0
    #allocation3 [shape = 'u8[12288]{0}', space=vmem, size = 0x3000, scoped, tag = 'input window, operand 0']
    #allocation4 [shape = 's32[2]{0}', space=sflag, size = 0x8, scoped, tag = 'scoped memory for tpu_custom_call.1']
    #allocation5 [shape = 's32[2]{0}', space=sflag, size = 0x8, scoped, tag = 'scoped memory for tpu_custom_call.1']
    #allocation6 [shape = 'u8[2048]{0}', space=vmem, size = 0x800, scoped, tag = 'input window, operand 1, single buffered']
    #allocation7 [shape = 's32[1]{0}', space=sflag, size = 0x4, scoped, tag = 'scoped memory for tpu_custom_call.1']
    #allocation8 [shape = 'u8[12288]{0}', space=vmem, size = 0x3000, scoped, tag = 'output window, operand 0']
    %10 = vsyncpa [#allocation4], 0
    %s11 = scalar_lea.sflag [#allocation4], 1
    %12 = vsyncpa %s11, 0
    %13 = vsyncpa [#allocation7], 0
    %14 = vsyncpa [#allocation5], 0
    %s15 = scalar_lea.sflag [#allocation5], 1
    %16 = vsyncpa %s15, 0
    loop: start=0, step=1, limit=4
    $region2: #{tpu_custom_call.1} parent=1 // loop_pre_header
      _
    $region3: #{tpu_custom_call.1} parent=1 // loop_header
      %s18 = sphi 0, %s22
      %p19 = scmp.ge.s32.totalorder %s18, 4
      %s28 = sphi 0, %s30
      %s31 = sphi 0, %s28
      %s32 = sphi 0, %s31
      %s48 = sphi 0, %s32
      %s52 = sphi 0, %s52
      %s54 = sphi 0, %s52
      %s55 = sphi 0, %s54
      %s69 = sphi 0, %s55
      %s73 = sphi 0, %s73
      %s75 = sphi 0, %s73
      %s76 = sphi 0, %s75
      %s90 = sphi 0, %s76
      %s96 = sphi 0, %s98
      %s99 = sphi 0, %s96
      %s100 = sphi 0, %s99
      %s116 = sphi 0, %s100
      %s122 = sphi 0, %s124
      %s125 = sphi 0, %s122
      %s126 = sphi 0, %s125
      %s142 = sphi 0, %s126
    $region4: #{tpu_custom_call.1} parent=1 // loop_header_branch
      %21 = sbr.rel (%p19) target = $region8
    $region5: #{tpu_custom_call.1} parent=1 // loop_body
      %s23 = ssub.s32 %s18, 1
      %s24 = ssub.s32 %s18, 2
      %s25 = sadd.s32 %s18, 1
      %s26 = ssub.s32 %s18, %s25
      %p27 = scmp.eq.s32.totalorder %s26, 0
      %s29 = sadd.s32 %s28, 1
      %s30 = scalar_select %p27, %s28, %s29
      %p33 = pneg %p27
      %p34 = scmp.eq.s32.totalorder %s18, 1
      %p35 = por %p33, %p34
      %p36 = scmp.ne.s32.totalorder %s28, %s31
      %p37 = scmp.eq.s32.totalorder %s18, 0
      %p38 = por %p36, %p37
      %p39 = scmp.ne.s32.totalorder %s28, %s31
      %p40 = scmp.eq.s32.totalorder %s23, 1
      %p41 = por %p39, %p40
      %p42 = scmp.ne.s32.totalorder %s31, %s32
      %p43 = scmp.eq.s32.totalorder %s23, 0
      %p44 = por %p42, %p43
      %p45 = scmp.ne.s32.totalorder %s31, %s32
      %p46 = scmp.eq.s32.totalorder %s24, 1
      %p47 = por %p45, %p46
      %p49 = scmp.ne.s32.totalorder %s32, %s48
      %p50 = scmp.eq.s32.totalorder %s24, 0
      %p51 = por %p49, %p50
      %s53 = sadd.s32 %s52, 1
      %p56 = scmp.eq.s32.totalorder %s18, 1
      %p57 = scmp.ne.s32.totalorder %s52, %s54
      %p58 = scmp.eq.s32.totalorder %s18, 0
      %p59 = por %p57, %p58
      %p60 = scmp.ne.s32.totalorder %s52, %s54
      %p61 = scmp.eq.s32.totalorder %s23, 1
      %p62 = por %p60, %p61
      %p63 = scmp.ne.s32.totalorder %s54, %s55
      %p64 = scmp.eq.s32.totalorder %s23, 0
      %p65 = por %p63, %p64
      %p66 = scmp.ne.s32.totalorder %s54, %s55
      %p67 = scmp.eq.s32.totalorder %s24, 1
      %p68 = por %p66, %p67
      %p70 = scmp.ne.s32.totalorder %s55, %s69
      %p71 = scmp.eq.s32.totalorder %s24, 0
      %p72 = por %p70, %p71
      %s74 = sadd.s32 %s73, 1
      %p77 = scmp.eq.s32.totalorder %s18, 1
      %p78 = scmp.ne.s32.totalorder %s73, %s75
      %p79 = scmp.eq.s32.totalorder %s18, 0
      %p80 = por %p78, %p79
      %p81 = scmp.ne.s32.totalorder %s73, %s75
      %p82 = scmp.eq.s32.totalorder %s23, 1
      %p83 = por %p81, %p82
      %p84 = scmp.ne.s32.totalorder %s75, %s76
      %p85 = scmp.eq.s32.totalorder %s23, 0
      %p86 = por %p84, %p85
      %p87 = scmp.ne.s32.totalorder %s75, %s76
      %p88 = scmp.eq.s32.totalorder %s24, 1
      %p89 = por %p87, %p88
      %p91 = scmp.ne.s32.totalorder %s76, %s90
      %p92 = scmp.eq.s32.totalorder %s24, 0
      %p93 = por %p91, %p92
      %s94 = ssub.s32 %s18, %s25
      %p95 = scmp.eq.s32.totalorder %s94, 0
      %s97 = sadd.s32 %s96, 1
      %s98 = scalar_select %p95, %s96, %s97
      %p101 = pneg %p95
      %p102 = scmp.eq.s32.totalorder %s18, 1
      %p103 = por %p101, %p102
      %p104 = scmp.ne.s32.totalorder %s96, %s99
      %p105 = scmp.eq.s32.totalorder %s18, 0
      %p106 = por %p104, %p105
      %p107 = scmp.ne.s32.totalorder %s96, %s99
      %p108 = scmp.eq.s32.totalorder %s23, 1
      %p109 = por %p107, %p108
      %p110 = scmp.ne.s32.totalorder %s99, %s100
      %p111 = scmp.eq.s32.totalorder %s23, 0
      %p112 = por %p110, %p111
      %p113 = scmp.ne.s32.totalorder %s99, %s100
      %p114 = scmp.eq.s32.totalorder %s24, 1
      %p115 = por %p113, %p114
      %p117 = scmp.ne.s32.totalorder %s100, %s116
      %p118 = scmp.eq.s32.totalorder %s24, 0
      %p119 = por %p117, %p118
      %s120 = ssub.s32 %s18, %s25
      %p121 = scmp.eq.s32.totalorder %s120, 0
      %s123 = sadd.s32 %s122, 1
      %s124 = scalar_select %p121, %s122, %s123
      %p127 = pneg %p121
      %p128 = scmp.eq.s32.totalorder %s18, 1
      %p129 = por %p127, %p128
      %p130 = scmp.ne.s32.totalorder %s122, %s125
      %p131 = scmp.eq.s32.totalorder %s18, 0
      %p132 = por %p130, %p131
      %p133 = scmp.ne.s32.totalorder %s122, %s125
      %p134 = scmp.eq.s32.totalorder %s23, 1
      %p135 = por %p133, %p134
      %p136 = scmp.ne.s32.totalorder %s125, %s126
      %p137 = scmp.eq.s32.totalorder %s23, 0
      %p138 = por %p136, %p137
      %p139 = scmp.ne.s32.totalorder %s125, %s126
      %p140 = scmp.eq.s32.totalorder %s24, 1
      %p141 = por %p139, %p140
      %p143 = scmp.ne.s32.totalorder %s126, %s142
      %p144 = scmp.eq.s32.totalorder %s24, 0
      %p145 = por %p143, %p144
      %p146 = scmp.le.s32.totalorder 1, %s18
      %p147 = scmp.lt.s32.totalorder %s18, 3
      %p148 = pnand %p146, %p147
      %p149 = pneg %p148
      // Predicated region
      $region9: #{tpu_custom_call.1} parent=5 // pred_check
        _
      $region10: #{tpu_custom_call.1} parent=5 // pred_check_branch
        %151 = sbr.rel (%p148) target = $region12
      $region11: #{tpu_custom_call.1} parent=5 // pred_region
        %s152 = ssub.s32 %s18, 1
        // Predicated region
        $region13: #{tpu_custom_call.1} parent=11 // pred_check
          %p153 = pneg %p65
        $region14: #{tpu_custom_call.1} parent=11 // pred_check_branch
          %155 = sbr.rel (%p153) target = $region16
        $region15: #{tpu_custom_call.1} parent=11 // pred_region
          %s157 = ssub.s32 64, 64
          %158 = vsyncadd [#allocation7], %s157
          %s160 = sshll.u32 [#allocation6], 4
          %s161 = int_to_ptr.vmem [resolvable:$true] %s160
          %163 = dma.hbm_to_vmem [thread:$0]  %s1, 64, %s161, [#allocation7]
        $region16: #{tpu_custom_call.1} parent=11 // pred_fallthru
          _
        // Predicated region
        $region17: #{tpu_custom_call.1} parent=11 // pred_check
          %p164 = pneg %p86
        $region18: #{tpu_custom_call.1} parent=11 // pred_check_branch
          %166 = sbr.rel (%p164) target = $region20
        $region19: #{tpu_custom_call.1} parent=11 // pred_region
          _
        $region20: #{tpu_custom_call.1} parent=11 // pred_fallthru
          _
      $region12: #{tpu_custom_call.1} parent=5 // pred_fallthru
        _
      %p167 = scmp.lt.s32.totalorder %s18, 2
      // Predicated region
      $region21: #{tpu_custom_call.1} parent=5 // pred_check
        %p168 = pneg %p167
      $region22: #{tpu_custom_call.1} parent=5 // pred_check_branch
        %170 = sbr.rel (%p168) target = $region24
      $region23: #{tpu_custom_call.1} parent=5 // pred_region
        // Predicated region
        $region25: #{tpu_custom_call.1} parent=23 // pred_check
          %p171 = pneg %p38
        $region26: #{tpu_custom_call.1} parent=23 // pred_check_branch
          %173 = sbr.rel (%p171) target = $region28
        $region27: #{tpu_custom_call.1} parent=23 // pred_region
          %s174 = sand.u32 %s28, 1
          %s175 = scalar_lea.sflag [#allocation4], %s174
          %s176 = sand.u32 %s28, 1
          %s177 = smul.addr %s176, 12
          %s178 = scalar_lea.vmem [#allocation3], %s177
          %s180 = ssub.s32 192, 192
          %181 = vsyncadd %s175, %s180
          %s182 = smul.addr %s18, 3
          %s183 = smul.addr %s182, 64
          %s184 = scalar_lea.hbm %s0, %s183
          %s186 = sshll.u32 %s178, 4
          %s187 = int_to_ptr.vmem [resolvable:$true] %s186
          %189 = dma.hbm_to_vmem [thread:$0]  %s184, 192, %s187, %s175
        $region28: #{tpu_custom_call.1} parent=23 // pred_fallthru
          _
      $region24: #{tpu_custom_call.1} parent=5 // pred_fallthru
        _
      %p190 = scmp.le.s32.totalorder 1, %s18
      %p191 = scmp.lt.s32.totalorder %s18, 3
      %p192 = pnand %p190, %p191
      %p193 = pneg %p192
      // Predicated region
      $region29: #{tpu_custom_call.1} parent=5 // pred_check
        _
      $region30: #{tpu_custom_call.1} parent=5 // pred_check_branch
        %195 = sbr.rel (%p192) target = $region32
      $region31: #{tpu_custom_call.1} parent=5 // pred_region
        %s196 = ssub.s32 %s18, 1
        %s197 = sand.u32 %s31, 1
        %s198 = scalar_lea.sflag [#allocation4], %s197
        %s199 = sand.u32 %s31, 1
        %s200 = smul.addr %s199, 12
        %s201 = scalar_lea.vmem [#allocation3], %s200
        // Predicated region
        $region33: #{tpu_custom_call.1} parent=31 // pred_check
          %p202 = pneg %p44
        $region34: #{tpu_custom_call.1} parent=31 // pred_check_branch
          %204 = sbr.rel (%p202) target = $region36
        $region35: #{tpu_custom_call.1} parent=31 // pred_region
          %205 = dma.done %s198, 192
        $region36: #{tpu_custom_call.1} parent=31 // pred_fallthru
          _
        // Predicated region
        $region37: #{tpu_custom_call.1} parent=31 // pred_check
          %p206 = pneg %p65
        $region38: #{tpu_custom_call.1} parent=31 // pred_check_branch
          %208 = sbr.rel (%p206) target = $region40
        $region39: #{tpu_custom_call.1} parent=31 // pred_region
          %209 = dma.done [#allocation7], 64
        $region40: #{tpu_custom_call.1} parent=31 // pred_fallthru
          _
        %s210 = sand.u32 %s31, 1
        %s211 = scalar_lea.sflag [#allocation4], %s210
        %s212 = sand.u32 %s31, 1
        %s213 = smul.addr %s212, 12
        %s214 = scalar_lea.vmem [#allocation3], %s213
        %p215 = pneg %p44
        %p216 = pneg %p41
        %p217 = pneg %p65
        %p218 = pneg %p62
        %p219 = pneg %p86
        %p220 = pneg %p83
        %p221 = pneg %p112
        %p222 = pneg %p109
        %s223 = sand.u32 %s99, 1
        %s224 = scalar_lea.sflag [#allocation5], %s223
        %s225 = sand.u32 %s99, 1
        %s226 = smul.addr %s225, 12
        %s227 = scalar_lea.vmem [#allocation8], %s226
        %p228 = pneg %p138
        %p229 = pneg %p135
        %p230 = scmp.lt.s32.totalorder %s23, 1
        %s231 = scalar_select %p230, %s23, 1
        %s232 = smul.addr %s231, 8
        %s233 = scalar_lea.vmem %s4, %s232
        %p234 = scmp.lt.s32.totalorder %s23, 1
        %s235 = scalar_select %p234, %s23, 1
        %s236 = smul.addr %s235, 8
        %s237 = scalar_lea.vmem %s4, %s236
        %v239 = vld [vmem:[%s201] sm:$0xff]
        %v240 = vld [vmem:[%s201 + $0x8] sm:$0xf]
        %v241 = vmax.f32 %v239, 0.0
        %v242 = vmax.f32 %v240, 0.0
        %v244 = vcombine.high %v241, %v241
        %246 = vst [vmem:[#allocation2] sm:$0xf] %v241
        %247 = vst [vmem:[#allocation2 + $0x8] sm:$0xf] %v244
        %vm248 = vcmask 257024
        %249 = vst.msk [vmem:[#allocation2 + $0x10] sm:$0xf] %vm248, %v242
        %v250 = vld [vmem:[%s201] sm:$0xff]
        %v251 = vld [vmem:[%s201 + $0x8] sm:$0xf]
        %v252 = vmax.f32 %v250, 0.0
        %v253 = vmax.f32 %v251, 0.0
        %v256 = vcombine.low %v252, %v252
        %v257 = vcombine.low %v253, %v253
        %258 = vrot.lane.b32.xlu0 %v256, 127
        %v259 = vpop.permute.xlu0 %258
        %260 = vrot.lane.b32.xlu0 %v252, 127
        %v261 = vpop.permute.xlu0 %260
        %262 = vrot.lane.b32.xlu0 %v257, 127
        %v263 = vpop.permute.xlu0 %262
        %vm264 = vcmask 1039360
        %v265 = vsel %vm264, %v259, %v261
        %v266 = vsel %vm264, %v261, %v263
        %270 = vst [vmem:[#allocation2] sm:$0xf0] %v265
        %271 = vst [vmem:[#allocation2 + $0x8] sm:$0xf0] %v266
        %vm272 = vcmask 261124
        %273 = vst.msk [vmem:[#allocation2 + $0x10] sm:$0xf0] %vm272, %v263
        %v274 = vld [vmem:[%s201] sm:$0xff]
        %v275 = vld [vmem:[%s201 + $0x8] sm:$0xf]
        %v276 = vmax.f32 %v274, 0.0
        %v277 = vmax.f32 %v275, 0.0
        %v280 = vcombine.high %v276, %v276
        %281 = vrot.lane.b32.xlu0 %v276, 126
        %v282 = vpop.permute.xlu0 %281
        %283 = vrot.lane.b32.xlu0 %v280, 126
        %v284 = vpop.permute.xlu0 %283
        %285 = vrot.lane.b32.xlu0 %v277, 126
        %v286 = vpop.permute.xlu0 %285
        %vm287 = vcmask 1031168
        %v288 = vsel %vm287, %v282, %v284
        %v289 = vsel %vm287, %v284, %v286
        %293 = vst [vmem:[#allocation2 + $0x18] sm:$0xf] %v288
        %294 = vst [vmem:[#allocation2 + $0x20] sm:$0xf] %v289
        %295 = vst.msk [vmem:[#allocation2 + $0x28] sm:$0xf] %vm248, %v286
        %v296 = vld [vmem:[%s201] sm:$0xff]
        %v297 = vld [vmem:[%s201 + $0x8] sm:$0xf]
        %v298 = vmax.f32 %v296, 0.0
        %v299 = vmax.f32 %v297, 0.0
        %v302 = vcombine.low %v298, %v298
        %v303 = vcombine.low %v299, %v299
        %304 = vrot.lane.b32.xlu0 %v302, 110
        %v305 = vpop.permute.xlu0 %304
        %306 = vrot.lane.b32.xlu0 %v298, 110
        %v307 = vpop.permute.xlu0 %306
        %308 = vrot.lane.b32.xlu0 %v303, 110
        %v309 = vpop.permute.xlu0 %308
        %vm310 = vcmask 900096
        %v311 = vsel %vm310, %v305, %v307
        %v312 = vsel %vm310, %v307, %v309
        %316 = vst [vmem:[#allocation2 + $0x18] sm:$0xf0] %v311
        %317 = vst [vmem:[#allocation2 + $0x20] sm:$0xf0] %v312
        %318 = vst.msk [vmem:[#allocation2 + $0x28] sm:$0xf0] %vm272, %v309
        %v319 = vld [vmem:[%s201] sm:$0xff]
        %v320 = vld [vmem:[%s201 + $0x8] sm:$0xf]
        %v321 = vmax.f32 %v319, 0.0
        %v322 = vmax.f32 %v320, 0.0
        %v325 = vcombine.high %v321, %v321
        %326 = vrot.lane.b32.xlu0 %v321, 109
        %v327 = vpop.permute.xlu0 %326
        %328 = vrot.lane.b32.xlu0 %v325, 109
        %v329 = vpop.permute.xlu0 %328
        %330 = vrot.lane.b32.xlu0 %v322, 109
        %v331 = vpop.permute.xlu0 %330
        %vm332 = vcmask 891904
        %v333 = vsel %vm332, %v327, %v329
        %v334 = vsel %vm332, %v329, %v331
        %338 = vst [vmem:[#allocation2 + $0x30] sm:$0xf] %v333
        %339 = vst [vmem:[#allocation2 + $0x38] sm:$0xf] %v334
        %340 = vst.msk [vmem:[#allocation2 + $0x40] sm:$0xf] %vm248, %v331
        %v341 = vld [vmem:[%s201] sm:$0xff]
        %v342 = vld [vmem:[%s201 + $0x8] sm:$0xf]
        %v343 = vmax.f32 %v341, 0.0
        %v344 = vmax.f32 %v342, 0.0
        %v347 = vcombine.low %v343, %v343
        %v348 = vcombine.low %v344, %v344
        %349 = vrot.lane.b32.xlu0 %v347, 108
        %v350 = vpop.permute.xlu0 %349
        %351 = vrot.lane.b32.xlu0 %v343, 108
        %v352 = vpop.permute.xlu0 %351
        %353 = vrot.lane.b32.xlu0 %v348, 108
        %v354 = vpop.permute.xlu0 %353
        %vm355 = vcmask 883712
        %v356 = vsel %vm355, %v350, %v352
        %v357 = vsel %vm355, %v352, %v354
        %361 = vst [vmem:[#allocation2 + $0x30] sm:$0xf0] %v356
        %362 = vst [vmem:[#allocation2 + $0x38] sm:$0xf0] %v357
        %363 = vst.msk [vmem:[#allocation2 + $0x40] sm:$0xf0] %vm272, %v354
        %v364 = vld [vmem:[%s201] sm:$0xff]
        %v365 = vld [vmem:[%s201 + $0x8] sm:$0xf]
        %v366 = vmax.f32 %v364, 0.0
        %v367 = vmax.f32 %v365, 0.0
        %v370 = vcombine.high %v366, %v366
        %371 = vrot.lane.b32.xlu0 %v366, 92
        %v372 = vpop.permute.xlu0 %371
        %373 = vrot.lane.b32.xlu0 %v370, 92
        %v374 = vpop.permute.xlu0 %373
        %375 = vrot.lane.b32.xlu0 %v367, 92
        %v376 = vpop.permute.xlu0 %375
        %vm377 = vcmask 752640
        %v378 = vsel %vm377, %v372, %v374
        %v379 = vsel %vm377, %v374, %v376
        %383 = vst [vmem:[#allocation2 + $0x48] sm:$0xf] %v378
        %384 = vst [vmem:[#allocation2 + $0x50] sm:$0xf] %v379
        %385 = vst.msk [vmem:[#allocation2 + $0x58] sm:$0xf] %vm248, %v376
        %v386 = vld [vmem:[%s201] sm:$0xff]
        %v387 = vld [vmem:[%s201 + $0x8] sm:$0xf]
        %v388 = vmax.f32 %v386, 0.0
        %v389 = vmax.f32 %v387, 0.0
        %v392 = vcombine.low %v388, %v388
        %v393 = vcombine.low %v389, %v389
        %394 = vrot.lane.b32.xlu0 %v392, 91
        %v395 = vpop.permute.xlu0 %394
        %396 = vrot.lane.b32.xlu0 %v388, 91
        %v397 = vpop.permute.xlu0 %396
        %398 = vrot.lane.b32.xlu0 %v393, 91
        %v399 = vpop.permute.xlu0 %398
        %vm400 = vcmask 744448
        %v401 = vsel %vm400, %v395, %v397
        %v402 = vsel %vm400, %v397, %v399
        %406 = vst [vmem:[#allocation2 + $0x48] sm:$0xf0] %v401
        %407 = vst [vmem:[#allocation2 + $0x50] sm:$0xf0] %v402
        %408 = vst.msk [vmem:[#allocation2 + $0x58] sm:$0xf0] %vm272, %v399
        %v409 = vld [vmem:[%s201] sm:$0xff]
        %v410 = vld [vmem:[%s201 + $0x8] sm:$0xf]
        %v411 = vmax.f32 %v409, 0.0
        %v412 = vmax.f32 %v410, 0.0
        %v415 = vcombine.high %v411, %v411
        %416 = vrot.lane.b32.xlu0 %v411, 90
        %v417 = vpop.permute.xlu0 %416
        %418 = vrot.lane.b32.xlu0 %v415, 90
        %v419 = vpop.permute.xlu0 %418
        %420 = vrot.lane.b32.xlu0 %v412, 90
        %v421 = vpop.permute.xlu0 %420
        %vm422 = vcmask 736256
        %v423 = vsel %vm422, %v417, %v419
        %v424 = vsel %vm422, %v419, %v421
        %428 = vst [vmem:[#allocation2 + $0x60] sm:$0xf] %v423
        %429 = vst [vmem:[#allocation2 + $0x68] sm:$0xf] %v424
        %430 = vst.msk [vmem:[#allocation2 + $0x70] sm:$0xf] %vm248, %v421
        %v431 = vld [vmem:[#allocation6] sm:$0xf]
        %v432 = vld [vmem:[#allocation2] sm:$0xff]
        %v433 = vld [vmem:[#allocation2 + $0x8] sm:$0xff]
        %v434 = vld [vmem:[#allocation2 + $0x10] sm:$0xff]
        %v435 = vld [vmem:[#allocation2 + $0x18] sm:$0xff]
        %v436 = vld [vmem:[#allocation2 + $0x20] sm:$0xff]
        %v437 = vld [vmem:[#allocation2 + $0x28] sm:$0xff]
        %v438 = vld [vmem:[#allocation2 + $0x30] sm:$0xff]
        %v439 = vld [vmem:[#allocation2 + $0x38] sm:$0xff]
        %v440 = vld [vmem:[#allocation2 + $0x40] sm:$0xff]
        %v441 = vld [vmem:[#allocation2 + $0x48] sm:$0xff]
        %v442 = vld [vmem:[#allocation2 + $0x50] sm:$0xff]
        %v443 = vld [vmem:[#allocation2 + $0x58] sm:$0xff]
        %v444 = vld [vmem:[#allocation2 + $0x60] sm:$0xf]
        %v445 = vld [vmem:[#allocation2 + $0x68] sm:$0xf]
        %v446 = vld [vmem:[#allocation2 + $0x70] sm:$0xf]
        %v447 = vpack.c.bf16 %v435, %v432
        %v448 = vpack.c.bf16 %v436, %v433
        %v449 = vpack.c.bf16 %v437, %v434
        %v450 = vpack.c.bf16 %v441, %v438
        %v451 = vpack.c.bf16 %v442, %v439
        %v452 = vpack.c.bf16 %v443, %v440
        %v453 = vpack.c.bf16 %v444, %v444
        %v454 = vpack.c.bf16 %v445, %v445
        %v455 = vpack.c.bf16 %v446, %v446
        %vm456 = vcmask 293888
        %v458 = vsel %vm456, %v431, 0
        %vm460 = vcmask 1041408
        %v462 = vsel %vm460, %v453, 0
        %v465 = vsel %vm460, %v454, 0
        %v468 = vsel %vm460, %v455, 0
        %470 = vmatprep.subr.bf16.mxu0 0
        %471 = vmatpush1.bf16.msra.mxu0 0
        %472 = vmatprep.subr.bf16.mxu0 0
        %473 = vmatpush1.bf16.msra.mxu0 0
        %474 = vmatprep.subr.bf16.mxu0 0
        %475 = vmatpush1.bf16.msra.mxu0 0
        %476 = vmatprep.subr.bf16.mxu0 0
        %477 = vmatpush1.bf16.msra.mxu0 0
        %478 = vmatprep.subr.bf16.mxu0 0
        %479 = vmatpush1.bf16.msra.mxu0 0
        %480 = vmatprep.subr.bf16.mxu0 %v465
        %481 = vmatpush1.bf16.msra.mxu0 %v462
        %482 = vmatprep.subr.bf16.mxu0 %v451
        %483 = vmatpush1.bf16.msra.mxu0 %v450
        %484 = vmatprep.subr.bf16.mxu0 %v448
        %485 = vmatpush1.bf16.msra.mxu0 %v447
        %486 = vmatprep.subr.bf16.mxu0 0
        %487 = vmatpush2.bf16.msra.mxu0 0
        %488 = vmatprep.subr.bf16.mxu0 0
        %489 = vmatpush2.bf16.msra.mxu0 0
        %490 = vmatprep.subr.bf16.mxu0 0
        %491 = vmatpush2.bf16.msra.mxu0 0
        %492 = vmatprep.subr.bf16.mxu0 0
        %493 = vmatpush2.bf16.msra.mxu0 0
        %494 = vmatprep.subr.bf16.mxu0 0
        %495 = vmatpush2.bf16.msra.mxu0 0
        %496 = vmatprep.subr.bf16.mxu0 0
        %497 = vmatpush2.bf16.msra.mxu0 0
        %498 = vmatprep.subr.bf16.mxu0 0
        %499 = vmatpush2.bf16.msra.mxu0 0
        %500 = vmatprep.subr.bf16.mxu0 0
        %501 = vmatpush2.bf16.msra.mxu0 0
        %502 = vmatprep.mubr.bf16.mxu0 0
        %503 = vmatmul.mubr.bf16.gmra.mxu0 %v458
        %v504 = vpop.f32.mrf.mxu0
        %v505 = vadd.f32 0.0, %v504
        %v506 = vpop.f32.mrf.mxu0
        %v507 = vadd.f32 0.0, %v506
        %v508 = vpop.f32.mrf.mxu0
        %v509 = vpop.f32.mrf.mxu0
        %510 = vdwg.mxu0
        %511 = vmatprep.subr.bf16.mxu0 0
        %512 = vmatpush1.bf16.msra.mxu0 0
        %513 = vmatprep.subr.bf16.mxu0 0
        %514 = vmatpush1.bf16.msra.mxu0 0
        %515 = vmatprep.subr.bf16.mxu0 0
        %516 = vmatpush1.bf16.msra.mxu0 0
        %517 = vmatprep.subr.bf16.mxu0 0
        %518 = vmatpush1.bf16.msra.mxu0 0
        %519 = vmatprep.subr.bf16.mxu0 0
        %520 = vmatpush1.bf16.msra.mxu0 0
        %521 = vmatprep.subr.bf16.mxu0 0
        %522 = vmatpush1.bf16.msra.mxu0 %v468
        %523 = vmatprep.subr.bf16.mxu0 0
        %524 = vmatpush1.bf16.msra.mxu0 %v452
        %525 = vmatprep.subr.bf16.mxu0 0
        %526 = vmatpush1.bf16.msra.mxu0 %v449
        %527 = vmatprep.subr.bf16.mxu0 0
        %528 = vmatpush2.bf16.msra.mxu0 0
        %529 = vmatprep.subr.bf16.mxu0 0
        %530 = vmatpush2.bf16.msra.mxu0 0
        %531 = vmatprep.subr.bf16.mxu0 0
        %532 = vmatpush2.bf16.msra.mxu0 0
        %533 = vmatprep.subr.bf16.mxu0 0
        %534 = vmatpush2.bf16.msra.mxu0 0
        %535 = vmatprep.subr.bf16.mxu0 0
        %536 = vmatpush2.bf16.msra.mxu0 0
        %537 = vmatprep.subr.bf16.mxu0 0
        %538 = vmatpush2.bf16.msra.mxu0 0
        %539 = vmatprep.subr.bf16.mxu0 0
        %540 = vmatpush2.bf16.msra.mxu0 0
        %541 = vmatprep.subr.bf16.mxu0 0
        %542 = vmatpush2.bf16.msra.mxu0 0
        %543 = vmatprep.mubr.bf16.mxu0 0
        %544 = vmatmul.mubr.bf16.gmra.mxu0 %v458
        %v545 = vpop.f32.mrf.mxu0
        %v546 = vadd.f32 0.0, %v545
        %v547 = vpop.f32.mrf.mxu0
        %v548 = vpop.f32.mrf.mxu0
        %v549 = vpop.f32.mrf.mxu0
        %550 = vdwg.mxu0
        %v551 = vpack.c.bf16 %v505, %v505
        %v552 = vpack.c.bf16 %v507, %v507
        %v553 = vpack.c.bf16 %v546, %v546
        %v557 = vunpack.c.l.b16 %v551
        %v558 = vunpack.c.l.b16 %v552
        %v559 = vunpack.c.l.b16 %v553
        %v560 = vpack.c.b16 %v558, %v557
        %v561 = vpack.c.b16 %v559, %v559
        %564 = vst [vmem:[%s227] sm:$0xff] %v560
        %565 = vst.msk [vmem:[%s227 + $0x8] sm:$0xf] %vm248, %v561
        %v566 = vld [vmem:[%s2] sm:$0x7]
        %v568 = vlaneseq
        %v569 = vshrl.u32 %v568, 7
        %v570 = vsub.s32 0, %v569
        %v571 = vrot.slane %v566, %v570
        %v572 = vlaneseq
        %v573 = vshrl.u32 %v572, 7
        %v574 = vsub.s32 1, %v573
        %v575 = vrot.slane %v566, %v574
        %v576 = vlaneseq
        %v577 = vshrl.u32 %v576, 7
        %v578 = vsub.s32 2, %v577
        %v579 = vrot.slane %v566, %v578
        %v583 = vmul.f32 %v505, %v571
        %v584 = vmul.f32 %v507, %v575
        %v585 = vmul.f32 %v546, %v579
        %v586 = vadd.f32 %v583, %v584
        %vm587 = vcmask 261120
        %v588 = vsel %vm587, %v585, 0.0
        %v589 = vadd.f32 %v586, %v588
        %590 = vadd.xlane.f32.xlu0 %v589
        %v591 = vpop.xlane.xlu0 %590
        %vm592 = vcmask 7168
        %593 = vst.msk [vmem:[%s237] sm:$0xff] %vm592, %v591
        %v594 = vmul.f32 %v583, %v583
        %v595 = vmul.f32 %v584, %v584
        %v596 = vmul.f32 %v585, %v585
        %v597 = vadd.f32 %v594, %v595
        %v598 = vsel %vm587, %v596, 0.0
        %v599 = vadd.f32 %v597, %v598
        %600 = vadd.xlane.f32.xlu0 %v599
        %v601 = vpop.xlane.xlu0 %600
        %vm602 = vcmask 15368
        %603 = vst.msk [vmem:[%s237] sm:$0xff] %vm602, %v601
        %s604 = sand.u32 %s99, 1
        %s605 = scalar_lea.sflag [#allocation5], %s604
        %s606 = sand.u32 %s99, 1
        %s607 = smul.addr %s606, 12
        %s608 = scalar_lea.vmem [#allocation8], %s607
        %p609 = scmp.lt.s32.totalorder %s23, 1
        %s610 = scalar_select %p609, %s23, 1
        %s611 = smul.addr %s610, 8
        %s612 = scalar_lea.vmem %s4, %s611
        // Predicated region
        $region41: #{tpu_custom_call.1} parent=31 // pred_check
          %p613 = pneg %p109
        $region42: #{tpu_custom_call.1} parent=31 // pred_check_branch
          %615 = sbr.rel (%p613) target = $region44
        $region43: #{tpu_custom_call.1} parent=31 // pred_region
          %s617 = ssub.s32 192, 192
          %618 = vsyncadd %s605, %s617
          %s619 = smul.addr %s23, 3
          %s620 = smul.addr %s619, 64
          %s621 = scalar_lea.hbm %s3, %s620
          %s623 = sshll.u32 %s608, 4
          %s624 = int_to_ptr.vmem [resolvable:$true] %s623
          %626 = dma.vmem_to_hbm [thread:$0]  %s624, 192, %s621, %s605
        $region44: #{tpu_custom_call.1} parent=31 // pred_fallthru
          _
        // Predicated region
        $region45: #{tpu_custom_call.1} parent=31 // pred_check
          %p627 = pneg %p135
        $region46: #{tpu_custom_call.1} parent=31 // pred_check_branch
          %629 = sbr.rel (%p627) target = $region48
        $region47: #{tpu_custom_call.1} parent=31 // pred_region
          _
        $region48: #{tpu_custom_call.1} parent=31 // pred_fallthru
          _
      $region32: #{tpu_custom_call.1} parent=5 // pred_fallthru
        _
      %p630 = scmp.le.s32.totalorder 2, %s18
      // Predicated region
      $region49: #{tpu_custom_call.1} parent=5 // pred_check
        %p631 = pneg %p630
      $region50: #{tpu_custom_call.1} parent=5 // pred_check_branch
        %633 = sbr.rel (%p631) target = $region52
      $region51: #{tpu_custom_call.1} parent=5 // pred_region
        %s634 = ssub.s32 %s18, 2
        // Predicated region
        $region53: #{tpu_custom_call.1} parent=51 // pred_check
          %p635 = pneg %p115
        $region54: #{tpu_custom_call.1} parent=51 // pred_check_branch
          %637 = sbr.rel (%p635) target = $region56
        $region55: #{tpu_custom_call.1} parent=51 // pred_region
          %s638 = sand.u32 %s100, 1
          %s639 = scalar_lea.sflag [#allocation5], %s638
          %s640 = sand.u32 %s100, 1
          %s641 = smul.addr %s640, 12
          %s642 = scalar_lea.vmem [#allocation8], %s641
          %643 = dma.done %s639, 192
        $region56: #{tpu_custom_call.1} parent=51 // pred_fallthru
          _
        // Predicated region
        $region57: #{tpu_custom_call.1} parent=51 // pred_check
          %p644 = pneg %p141
        $region58: #{tpu_custom_call.1} parent=51 // pred_check_branch
          %646 = sbr.rel (%p644) target = $region60
        $region59: #{tpu_custom_call.1} parent=51 // pred_region
          %p647 = scmp.lt.s32.totalorder %s24, 1
          %s648 = scalar_select %p647, %s24, 1
          %s649 = smul.addr %s648, 8
          %s650 = scalar_lea.vmem %s4, %s649
        $region60: #{tpu_custom_call.1} parent=51 // pred_fallthru
          _
      $region52: #{tpu_custom_call.1} parent=5 // pred_fallthru
        _
    $region6: #{tpu_custom_call.1} parent=1 // loop_footer
      %s22 = sadd.s32 1, %s18
    $region7: #{tpu_custom_call.1} parent=1 // loop_footer_branch
      %17 = sbr.rel target = $region3
    $region8: #{tpu_custom_call.1} parent=1 // loop_exit
      _
    %651 = vsyncpa [#allocation4], 1
    %s652 = scalar_lea.sflag [#allocation4], 1
    %653 = vsyncpa %s652, 1
    %654 = vsyncpa [#allocation7], 1
    %655 = vsyncpa [#allocation5], 1
    %s656 = scalar_lea.sflag [#allocation5], 1
    %657 = vsyncpa %s656, 1

</llo_original>
